<compile_context>
chip_gen: v5e
topology: v5e:2x2
jax: 0.10.0
libtpu: 0.0.40
codegen_flags: <defaults>
</compile_context>

<pallas_src>
import jax
import jax.numpy as jnp
from jax.experimental import pallas as pl
from jax.experimental.pallas import tpu as pltpu


def _vmem_capacity_bytes():
    try:
        return int(pltpu.get_tpu_info().vmem_capacity_bytes)
    except Exception:
        return 64 << 20  # conservative fallback (v7x per-core VMEM)


def _round_down(x, m):
    return (x // m) * m


# ---------------------------------------------------------------------------
# Cross-entropy: logits (B, C, HW) -> blocks (TB, C, TN), classes on sublanes,
# spatial on lanes.  Grid = (batch blocks [parallel], spatial tiles [arbitrary]).
# Per-batch-block partial sums are written to a (n_bt, 1, 1) output and summed
# in XLA.
# ---------------------------------------------------------------------------
def _make_ce_kernel(B, HW, TB, TN, n_tiles):
    def kernel(logits_ref, labels_ref, out_ref, acc_ref):
        bt = pl.program_id(0)
        t = pl.program_id(1)

        @pl.when(t == 0)
        def _():
            acc_ref[...] = jnp.zeros_like(acc_ref)

        x = logits_ref[...].astype(jnp.float32)        # (TB, C, TN)
        lbl = labels_ref[...]                          # (TB, 1, TN) int32
        tb, c, tn = x.shape

        # logsumexp over the class (sublane) axis.
        m = jnp.max(x, axis=1, keepdims=True)                               # (TB,1,TN)
        lse = m + jnp.log(jnp.sum(jnp.exp(x - m), axis=1, keepdims=True))   # (TB,1,TN)

        # Gather the logit at the label via a class-iota match.
        cls = jax.lax.broadcasted_iota(jnp.int32, (tb, c, tn), 1)
        tgt = jnp.sum(jnp.where(cls == lbl, x, 0.0), axis=1, keepdims=True)

        # Ragged-tail masks: garbage columns (>= HW) / batch rows (>= B) of the
        # edge blocks contribute exactly zero (per-column reductions keep any
        # garbage-produced NaN confined to its own masked column).
        col = jax.lax.broadcasted_iota(jnp.int32, (1, 1, tn), 2) + t * TN
        row = jax.lax.broadcasted_iota(jnp.int32, (tb, 1, 1), 0) + bt * TB
        valid = jnp.logical_and(col < HW, row < B)

        acc_ref[...] += jnp.sum(jnp.where(valid, lse - tgt, 0.0), axis=0)   # (1, TN)

        @pl.when(t == n_tiles - 1)
        def _():
            out_ref[...] = jnp.sum(acc_ref[...]).reshape(1, 1, 1)
    return kernel


# ---------------------------------------------------------------------------
# MSE: features as zero-copy (R, L) rows.  Grid = (outer [parallel], inner
# [arbitrary]); each outer chunk accumulates its own per-lane partials and
# writes one scalar partial, summed in XLA.
# ---------------------------------------------------------------------------
def _make_mse_kernel(R, TR, n_inner):
    def kernel(t_ref, s_ref, out_ref, acc_ref):
        o = pl.program_id(0)
        i = pl.program_id(1)

        @pl.when(i == 0)
        def _():
            acc_ref[...] = jnp.zeros_like(acc_ref)

        blk = o * n_inner + i                          # UNclamped global row block
        t = t_ref[...].astype(jnp.float32)             # (TR, L)
        s = s_ref[...].astype(jnp.float32)
        tr, _ = t.shape

        row = jax.lax.broadcasted_iota(jnp.int32, (tr, 1), 0) + blk * TR
        d = jnp.where(row < R, t - s, 0.0)             # mask before squaring
        acc_ref[...] += jnp.sum(d * d, axis=0, keepdims=True)   # (1, L)

        @pl.when(i == n_inner - 1)
        def _():
            out_ref[...] = jnp.sum(acc_ref[...]).reshape(1, 1, 1)
    return kernel


def no_conf_loss(alpha, pred_label_batch, true_label_batch,
                 teacher_feature_batch, student_feature_batch):
    """CrossEntropy(pred, squeeze(true,1)) + alpha * MSE(teacher, student).

    Assumes every label is a valid class index in [0, C); inputs may stay in
    bf16 in HBM (kernels upcast to f32 in VMEM).
    """
    # TODO(synk): torch CrossEntropyLoss ignore_index / class-weight options are
    # not implemented (the original module uses the defaults, so all labels are
    # assumed valid and the mean divides by B*H*W).
    B, C, H, W = pred_label_batch.shape
    HW = H * W
    N = B * HW

    vmem_cap = _vmem_capacity_bytes()
    if vmem_cap >= (100 << 20):      # v5e / v6e: 128 MiB physical VMEM
        ce_budget = 6 << 20
        mse_budget = 2 << 20         # per input buffer
    else:                            # v7x (64 MiB) or unknown
        ce_budget = 4 << 20
        mse_budget = 2 << 20

    # --- cross-entropy part: lane-dense (B, C, HW), zero-copy reshape -------
    logits = pred_label_batch.reshape(B, C, HW)
    labels = true_label_batch.reshape(B, 1, HW).astype(jnp.int32)

    ds_l = logits.dtype.itemsize
    col_bytes = C * ds_l + 4                       # logits column + int32 label
    if HW * col_bytes >= ce_budget:
        TB = 1
        TN = max(128, _round_down(ce_budget // col_bytes, 128))
        if TN >= HW:
            TN = HW                                # single full-width tile
    else:
        TN = HW
        TB = max(1, min(B, ce_budget // max(1, HW * col_bytes)))
        if B >= 2:
            TB = min(TB, pl.cdiv(B, 2))            # keep >=2 outer blocks (v7x 2 TCs)
    n_tiles = pl.cdiv(HW, TN)
    n_bt = pl.cdiv(B, TB)

    ce_in_bytes = TB * C * TN * ds_l + TB * TN * 4
    ce_vmem = int(2 * ce_in_bytes + 4 * TN + (4 << 20))

    ce_partials = pl.pallas_call(
        _make_ce_kernel(B, HW, TB, TN, n_tiles),
        out_shape=jax.ShapeDtypeStruct((n_bt, 1, 1), jnp.float32),
        grid=(n_bt, n_tiles),
        in_specs=[
            pl.BlockSpec((TB, C, TN), lambda bt, t: (bt, 0, t)),
            pl.BlockSpec((TB, 1, TN), lambda bt, t: (bt, 0, t)),
        ],
        out_specs=pl.BlockSpec((1, 1, 1), lambda bt, t: (bt, 0, 0)),
        scratch_shapes=[pltpu.VMEM((1, TN), jnp.float32)],
        compiler_params=pltpu.CompilerParams(
            dimension_semantics=("parallel", "arbitrary"),
            vmem_limit_bytes=ce_vmem),
    )(logits, labels)
    ce_sum = jnp.sum(ce_partials)

    # --- MSE part: zero-copy 2-D row tiling, no host padding ----------------
    feat_elems = teacher_feature_batch.size
    if feat_elems % 128 == 0:
        L = 128                                    # perfectly lane-dense rows
    else:
        L = H * W                                  # natural trailing dims, zero-copy
    R = feat_elems // L
    t2 = teacher_feature_batch.reshape(R, L)
    s2 = student_feature_batch.reshape(R, L)

    ds_f = max(t2.dtype.itemsize, s2.dtype.itemsize)
    TR = max(8, _round_down(mse_budget // max(1, L * ds_f), 8))
    if TR >= R:
        TR = R                                     # full extent (no 8-divisibility needed)
    n_blocks = pl.cdiv(R, TR)
    n_outer = 2 if n_blocks >= 2 else 1            # 2-way split for v7x's two TCs
    n_inner = pl.cdiv(n_blocks, n_outer)

    def _mse_in_map(o, i):
        # Clamp so steps past the last row block never issue an OOB DMA;
        # their contribution is masked to zero in-kernel via the row iota.
        return (jnp.minimum(o * n_inner + i, n_blocks - 1), 0)

    mse_in_bytes = 2 * TR * L * ds_f
    mse_vmem = int(2 * mse_in_bytes + 4 * L + (4 << 20))

    mse_partials = pl.pallas_call(
        _make_mse_kernel(R, TR, n_inner),
        out_shape=jax.ShapeDtypeStruct((n_outer, 1, 1), jnp.float32),
        grid=(n_outer, n_inner),
        in_specs=[
            pl.BlockSpec((TR, L), _mse_in_map),
            pl.BlockSpec((TR, L), _mse_in_map),
        ],
        out_specs=pl.BlockSpec((1, 1, 1), lambda o, i: (o, 0, 0)),
        scratch_shapes=[pltpu.VMEM((1, L), jnp.float32)],
        compiler_params=pltpu.CompilerParams(
            dimension_semantics=("parallel", "arbitrary"),
            vmem_limit_bytes=mse_vmem),
    )(t2, s2)
    mse_sum = jnp.sum(mse_partials)

    obj1 = ce_sum / jnp.float32(N)
    obj2 = jnp.asarray(alpha, jnp.float32) * (mse_sum / jnp.float32(feat_elems))
    return obj1 + obj2


def _reference(alpha, pred, true, teacher, student):
    """Plain-JAX reference matching torch semantics."""
    B, C, H, W = pred.shape
    logits = jnp.transpose(pred, (0, 2, 3, 1)).reshape(-1, C)
    labels = jnp.squeeze(true, axis=1).astype(jnp.int32).reshape(-1)
    logp = jax.nn.log_softmax(logits, axis=-1)
    ce = -jnp.mean(jnp.take_along_axis(logp, labels[:, None], axis=-1))
    mse = jnp.mean((teacher - student) ** 2)
    return ce + alpha * mse


if __name__ == "__main__":
    key = jax.random.PRNGKey(0)
    k1, k2, k3, k4 = jax.random.split(key, 4)

    B, C, H, W = 2, 16, 8, 8     # batch, classes, spatial
    D = 4                        # feature channels

    pred_label_batch = jax.random.normal(k1, (B, C, H, W), dtype=jnp.float32)
    true_label_batch = jax.random.randint(k2, (B, 1, H, W), 0, C, dtype=jnp.int32)
    teacher_feature_batch = jax.random.normal(k3, (B, D, H, W), dtype=jnp.float32)
    student_feature_batch = jax.random.normal(k4, (B, D, H, W), dtype=jnp.float32)
    alpha = jnp.float32(0.5)

    out = no_conf_loss(alpha, pred_label_batch, true_label_batch,
                       teacher_feature_batch, student_feature_batch)
    out = jax.block_until_ready(out)

    ref = _reference(alpha, pred_label_batch, true_label_batch,
                     teacher_feature_batch, student_feature_batch)
    assert jnp.allclose(out, ref, rtol=1e-5, atol=1e-5), (out, ref)

    print("KERNEL_OK")
</pallas_src>

<mosaic_0001>
module attributes {stable_mosaic.version = 11 : i64} {
  func.func @kernel(%arg0: i32, %arg1: i32, %arg2: memref<1x16x64xf32, #tpu.memory_space<vmem>>, %arg3: memref<1x1x64xi32, #tpu.memory_space<vmem>>, %arg4: memref<1x1x1xf32, #tpu.memory_space<vmem>>, %arg5: memref<1x64xf32, #tpu.memory_space<vmem>>) attributes {dimension_semantics = [#tpu.dimension_semantics<parallel>, #tpu.dimension_semantics<arbitrary>], iteration_bounds = array<i64: 2, 1>, scalar_prefetch = 0 : i64, scratch_operands = 1 : i64, tpu.core_type = #tpu.core_type<tc>, window_params = [{transform_indices = @transform_0, window_bounds = array<i64: 1, 16, 64>}, {transform_indices = @transform_1, window_bounds = array<i64: 1, 1, 64>}, {transform_indices = @transform_2, window_bounds = array<i64: 1, 1, 1>}]} {
    %c0_i32 = arith.constant 0 : i32
    %0 = arith.cmpi eq, %arg1, %c0_i32 : i32
    %1 = arith.extui %0 : i1 to i32
    %c0_i32_0 = arith.constant 0 : i32
    %2 = arith.cmpi ne, %1, %c0_i32_0 : i32
    scf.if %2 {
      %cst_18 = arith.constant 0.000000e+00 : f32
      %45 = vector.broadcast %cst_18 : f32 to vector<1x64xf32>
      %c0_19 = arith.constant 0 : index
      %c0_20 = arith.constant 0 : index
      %46 = vector.load %arg5[%c0_19, %c0_20] : memref<1x64xf32, #tpu.memory_space<vmem>>, vector<1x64xf32>
      tpu.vector_store %arg5[%c0_19, %c0_20], %45 {strides = array<i32>} : memref<1x64xf32, #tpu.memory_space<vmem>>, vector<1x64xf32>,
    } else {
    }
    %c0 = arith.constant 0 : index
    %c0_1 = arith.constant 0 : index
    %c0_2 = arith.constant 0 : index
    %3 = vector.load %arg2[%c0, %c0_1, %c0_2] : memref<1x16x64xf32, #tpu.memory_space<vmem>>, vector<1x16x64xf32>
    %c0_3 = arith.constant 0 : index
    %c0_4 = arith.constant 0 : index
    %c0_5 = arith.constant 0 : index
    %4 = vector.load %arg3[%c0_3, %c0_4, %c0_5] : memref<1x1x64xi32, #tpu.memory_space<vmem>>, vector<1x1x64xi32>
    %cst = arith.constant dense<0xFF800000> : vector<1x64xf32>
    %5 = vector.multi_reduction <maximumf>, %3, %cst [1] : vector<1x16x64xf32> to vector<1x64xf32>
    %6 = vector.shape_cast %5 : vector<1x64xf32> to vector<1x1x64xf32>
    %7 = vector.broadcast %6 : vector<1x1x64xf32> to vector<1x16x64xf32>
    %8 = arith.subf %3, %7 : vector<1x16x64xf32>
    %9 = math.exp %8 : vector<1x16x64xf32>
    %cst_6 = arith.constant dense<0.000000e+00> : vector<1x64xf32>
    %10 = vector.multi_reduction <add>, %9, %cst_6 [1] : vector<1x16x64xf32> to vector<1x64xf32>
    %11 = vector.shape_cast %10 : vector<1x64xf32> to vector<1x1x64xf32>
    %12 = math.log %11 : vector<1x1x64xf32>
    %13 = arith.addf %6, %12 : vector<1x1x64xf32>
    %14 = tpu.iota {dimensions = array<i32: 1>} : vector<1x16x64xi32>
    %15 = vector.broadcast %4 : vector<1x1x64xi32> to vector<1x16x64xi32>
    %16 = arith.cmpi eq, %14, %15 : vector<1x16x64xi32>
    %cst_7 = arith.constant 0.000000e+00 : f32
    %17 = vector.broadcast %cst_7 : f32 to vector<1x16x64xf32>
    %18 = arith.select %16, %3, %17 : vector<1x16x64xi1>, vector<1x16x64xf32>
    %cst_8 = arith.constant dense<0.000000e+00> : vector<1x64xf32>
    %19 = vector.multi_reduction <add>, %18, %cst_8 [1] : vector<1x16x64xf32> to vector<1x64xf32>
    %20 = vector.shape_cast %19 : vector<1x64xf32> to vector<1x1x64xf32>
    %21 = tpu.iota {dimensions = array<i32: 2>} : vector<1x1x64xi32>
    %c64_i32 = arith.constant 64 : i32
    %22 = arith.muli %arg1, %c64_i32 : i32
    %23 = vector.broadcast %22 : i32 to vector<1x1x64xi32>
    %24 = arith.addi %21, %23 : vector<1x1x64xi32>
    %25 = tpu.iota {dimensions = array<i32: 0>} : vector<1x1x1xi32>
    %c1_i32 = arith.constant 1 : i32
    %26 = arith.muli %arg0, %c1_i32 : i32
    %27 = vector.broadcast %26 : i32 to vector<1x1x1xi32>
    %28 = arith.addi %25, %27 : vector<1x1x1xi32>
    %c64_i32_9 = arith.constant 64 : i32
    %29 = vector.broadcast %c64_i32_9 : i32 to vector<1x1x64xi32>
    %30 = arith.cmpi slt, %24, %29 : vector<1x1x64xi32>
    %c2_i32 = arith.constant 2 : i32
    %31 = vector.broadcast %c2_i32 : i32 to vector<1x1x1xi32>
    %32 = arith.cmpi slt, %28, %31 : vector<1x1x1xi32>
    %33 = vector.broadcast %32 : vector<1x1x1xi1> to vector<1x1x64xi1>
    %34 = arith.andi %30, %33 : vector<1x1x64xi1>
    %c0_10 = arith.constant 0 : index
    %c0_11 = arith.constant 0 : index
    %35 = vector.load %arg5[%c0_10, %c0_11] : memref<1x64xf32, #tpu.memory_space<vmem>>, vector<1x64xf32>
    %36 = arith.subf %13, %20 : vector<1x1x64xf32>
    %cst_12 = arith.constant 0.000000e+00 : f32
    %37 = vector.broadcast %cst_12 : f32 to vector<1x1x64xf32>
    %38 = arith.select %34, %36, %37 : vector<1x1x64xi1>, vector<1x1x64xf32>
    %cst_13 = arith.constant dense<0.000000e+00> : vector<1x64xf32>
    %39 = vector.multi_reduction <add>, %38, %cst_13 [0] : vector<1x1x64xf32> to vector<1x64xf32>
    %40 = arith.addf %35, %39 : vector<1x64xf32>
    %c0_14 = arith.constant 0 : index
    %c0_15 = arith.constant 0 : index
    %41 = vector.load %arg5[%c0_14, %c0_15] : memref<1x64xf32, #tpu.memory_space<vmem>>, vector<1x64xf32>
    tpu.vector_store %arg5[%c0_14, %c0_15], %40 {strides = array<i32>} : memref<1x64xf32, #tpu.memory_space<vmem>>, vector<1x64xf32>,
    %c0_i32_16 = arith.constant 0 : i32
    %42 = arith.cmpi eq, %arg1, %c0_i32_16 : i32
    %43 = arith.extui %42 : i1 to i32
    %c0_i32_17 = arith.constant 0 : i32
    %44 = arith.cmpi ne, %43, %c0_i32_17 : i32
    scf.if %44 {
      %c0_18 = arith.constant 0 : index
      %c0_19 = arith.constant 0 : index
      %45 = vector.load %arg5[%c0_18, %c0_19] : memref<1x64xf32, #tpu.memory_space<vmem>>, vector<1x64xf32>
      %46 = vector.shape_cast %45 : vector<1x64xf32> to vector<1x1x64xf32>
      %cst_20 = arith.constant dense<0.000000e+00> : vector<1xf32>
      %47 = vector.multi_reduction <add>, %46, %cst_20 [1, 2] : vector<1x1x64xf32> to vector<1xf32>
      %48 = vector.shape_cast %47 : vector<1xf32> to vector<1x1x1xf32>
      %49 = vector.extract %48[0, 0, 0] : f32 from vector<1x1x1xf32>
      %50 = vector.broadcast %49 : f32 to vector<1x1x1xf32>
      %c0_21 = arith.constant 0 : index
      %c0_22 = arith.constant 0 : index
      %c0_23 = arith.constant 0 : index
      %51 = vector.load %arg4[%c0_21, %c0_22, %c0_23] : memref<1x1x1xf32, #tpu.memory_space<vmem>>, vector<1x1x1xf32>
      tpu.vector_store %arg4[%c0_21, %c0_22, %c0_23], %50 {strides = array<i32>} : memref<1x1x1xf32, #tpu.memory_space<vmem>>, vector<1x1x1xf32>,
    } else {
    }
    return
  }
  func.func @transform_0(%arg0: i32, %arg1: i32) -> (i32, i32, i32) {
    %c0_i32 = arith.constant 0 : i32
    %c0_i32_0 = arith.constant 0 : i32
    return %arg0, %c0_i32, %arg1 : i32, i32, i32
  }
  func.func @transform_1(%arg0: i32, %arg1: i32) -> (i32, i32, i32) {
    %c0_i32 = arith.constant 0 : i32
    %c0_i32_0 = arith.constant 0 : i32
    return %arg0, %c0_i32, %arg1 : i32, i32, i32
  }
  func.func @transform_2(%arg0: i32, %arg1: i32) -> (i32, i32, i32) {
    %c0_i32 = arith.constant 0 : i32
    %c0_i32_0 = arith.constant 0 : i32
    %c0_i32_1 = arith.constant 0 : i32
    return %arg0, %c0_i32, %c0_i32_0 : i32, i32, i32
  }
}

</mosaic_0001>

<llo_original>
// kernel: tpu_custom_call.1
$region0: #{tpu_custom_call.1}
  #allocation0 [shape = 'u32[]', space=smem, size = 0x4, offset = 0x4, fixed_abs, tag = 'smem constant byte address 0x4 - core index']
  #allocation1 [shape = 'u32[72,128]{1,0:T(1,128)}', space=vmem, size = 0x9000, scoped, tag = 'internal scratch']
  #allocation2 [shape = 'f32[1,64]{1,0:T(1,128)}', space=vmem, size = 0x200, scoped, tag = 'scratch operand']
  %s0 = inlined_call_operand.hbm [shape: f32[2,16,64], index: 0, kind: input, shape index: {}]
  %s1 = inlined_call_operand.hbm [shape: s32[2,1,64], index: 1, kind: input, shape index: {}]
  %s2 = inlined_call_operand.vmem [shape: f32[2,1,1], index: 2, kind: output, shape index: {}]
  %s3 = sld [smem:[#allocation0]]
  $region57: #{tpu_custom_call.1} parent=0
    _
  %s5 = ssub.s32 1, %s3
  %s6 = scalar_select 0, %s5, %s3
  $region1: #{tpu_custom_call.1} parent=0
    #allocation3 [shape = 'u8[16384]{0}', space=vmem, size = 0x4000, scoped, tag = 'input window, operand 0']
    #allocation4 [shape = 's32[2]{0}', space=sflag, size = 0x8, scoped, tag = 'scoped memory for tpu_custom_call.1']
    #allocation5 [shape = 'u8[1024]{0}', space=vmem, size = 0x400, scoped, tag = 'input window, operand 1']
    #allocation6 [shape = 's32[2]{0}', space=sflag, size = 0x8, scoped, tag = 'scoped memory for tpu_custom_call.1']
    %7 = vsyncpa [#allocation4], 0
    %s8 = scalar_lea.sflag [#allocation4], 1
    %9 = vsyncpa %s8, 0
    %10 = vsyncpa [#allocation6], 0
    %s11 = scalar_lea.sflag [#allocation6], 1
    %12 = vsyncpa %s11, 0
    loop: start=0, step=1, limit=4
    $region2: #{tpu_custom_call.1} parent=1 // loop_pre_header
      _
    $region3: #{tpu_custom_call.1} parent=1 // loop_header
      %s14 = sphi 0, %s18
      %p15 = scmp.ge.s32.totalorder %s14, 4
      %s21 = sphi 0, %s33
      %s22 = sphi 0, %s29
      %s23 = sphi 0, %s21
      %s24 = sphi 0, %s22
      %s25 = sphi 0, %s23
      %s26 = sphi 0, %s24
      %s38 = sphi 0, %s40
      %s41 = sphi 0, %s38
      %s42 = sphi 0, %s41
      %s58 = sphi 0, %s42
      %s66 = sphi 0, %s68
      %s69 = sphi 0, %s66
      %s70 = sphi 0, %s69
      %s86 = sphi 0, %s70
      %s92 = sphi 0, %s94
      %s95 = sphi 0, %s92
      %s96 = sphi 0, %s95
      %s112 = sphi 0, %s96
    $region4: #{tpu_custom_call.1} parent=1 // loop_header_branch
      %17 = sbr.rel (%p15) target = $region8
    $region5: #{tpu_custom_call.1} parent=1 // loop_body
      %s19 = ssub.s32 %s14, 1
      %s20 = ssub.s32 %s14, 2
      %s27 = sadd.s32 1, %s22
      %p28 = scmp.ge.s32.totalorder %s27, 1
      %s29 = scalar_select %p28, 0, %s27
      %s30 = sadd.s32 1, %s21
      %s31 = scalar_select %p28, %s30, %s21
      %p32 = scmp.ge.s32.totalorder %s31, 2
      %s33 = scalar_select %p32, 0, %s31
      %s34 = ssub.s32 %s21, %s33
      %s35 = ssub.s32 %s22, %s29
      %s36 = sor.u32 %s34, %s35
      %p37 = scmp.eq.s32.totalorder %s36, 0
      %s39 = sadd.s32 %s38, 1
      %s40 = scalar_select %p37, %s38, %s39
      %p43 = pneg %p37
      %p44 = scmp.eq.s32.totalorder %s14, 1
      %p45 = por %p43, %p44
      %p46 = scmp.ne.s32.totalorder %s38, %s41
      %p47 = scmp.eq.s32.totalorder %s14, 0
      %p48 = por %p46, %p47
      %p49 = scmp.ne.s32.totalorder %s38, %s41
      %p50 = scmp.eq.s32.totalorder %s19, 1
      %p51 = por %p49, %p50
      %p52 = scmp.ne.s32.totalorder %s41, %s42
      %p53 = scmp.eq.s32.totalorder %s19, 0
      %p54 = por %p52, %p53
      %p55 = scmp.ne.s32.totalorder %s41, %s42
      %p56 = scmp.eq.s32.totalorder %s20, 1
      %p57 = por %p55, %p56
      %p59 = scmp.ne.s32.totalorder %s42, %s58
      %p60 = scmp.eq.s32.totalorder %s20, 0
      %p61 = por %p59, %p60
      %s62 = ssub.s32 %s21, %s33
      %s63 = ssub.s32 %s22, %s29
      %s64 = sor.u32 %s62, %s63
      %p65 = scmp.eq.s32.totalorder %s64, 0
      %s67 = sadd.s32 %s66, 1
      %s68 = scalar_select %p65, %s66, %s67
      %p71 = pneg %p65
      %p72 = scmp.eq.s32.totalorder %s14, 1
      %p73 = por %p71, %p72
      %p74 = scmp.ne.s32.totalorder %s66, %s69
      %p75 = scmp.eq.s32.totalorder %s14, 0
      %p76 = por %p74, %p75
      %p77 = scmp.ne.s32.totalorder %s66, %s69
      %p78 = scmp.eq.s32.totalorder %s19, 1
      %p79 = por %p77, %p78
      %p80 = scmp.ne.s32.totalorder %s69, %s70
      %p81 = scmp.eq.s32.totalorder %s19, 0
      %p82 = por %p80, %p81
      %p83 = scmp.ne.s32.totalorder %s69, %s70
      %p84 = scmp.eq.s32.totalorder %s20, 1
      %p85 = por %p83, %p84
      %p87 = scmp.ne.s32.totalorder %s70, %s86
      %p88 = scmp.eq.s32.totalorder %s20, 0
      %p89 = por %p87, %p88
      %s90 = ssub.s32 %s21, %s33
      %p91 = scmp.eq.s32.totalorder %s90, 0
      %s93 = sadd.s32 %s92, 1
      %s94 = scalar_select %p91, %s92, %s93
      %p97 = pneg %p91
      %p98 = scmp.eq.s32.totalorder %s14, 1
      %p99 = por %p97, %p98
      %p100 = scmp.ne.s32.totalorder %s92, %s95
      %p101 = scmp.eq.s32.totalorder %s14, 0
      %p102 = por %p100, %p101
      %p103 = scmp.ne.s32.totalorder %s92, %s95
      %p104 = scmp.eq.s32.totalorder %s19, 1
      %p105 = por %p103, %p104
      %p106 = scmp.ne.s32.totalorder %s95, %s96
      %p107 = scmp.eq.s32.totalorder %s19, 0
      %p108 = por %p106, %p107
      %p109 = scmp.ne.s32.totalorder %s95, %s96
      %p110 = scmp.eq.s32.totalorder %s20, 1
      %p111 = por %p109, %p110
      %p113 = scmp.ne.s32.totalorder %s96, %s112
      %p114 = scmp.eq.s32.totalorder %s20, 0
      %p115 = por %p113, %p114
      %p116 = scmp.le.s32.totalorder 1, %s14
      %p117 = scmp.lt.s32.totalorder %s14, 3
      %p118 = pnand %p116, %p117
      %p119 = pneg %p118
      // Predicated region
      $region9: #{tpu_custom_call.1} parent=5 // pred_check
        _
      $region10: #{tpu_custom_call.1} parent=5 // pred_check_branch
        %121 = sbr.rel (%p118) target = $region12
      $region11: #{tpu_custom_call.1} parent=5 // pred_region
        %s122 = ssub.s32 %s14, 1
      $region12: #{tpu_custom_call.1} parent=5 // pred_fallthru
        _
      %p123 = scmp.lt.s32.totalorder %s14, 2
      // Predicated region
      $region13: #{tpu_custom_call.1} parent=5 // pred_check
        %p124 = pneg %p123
      $region14: #{tpu_custom_call.1} parent=5 // pred_check_branch
        %126 = sbr.rel (%p124) target = $region16
      $region15: #{tpu_custom_call.1} parent=5 // pred_region
        // Predicated region
        $region17: #{tpu_custom_call.1} parent=15 // pred_check
          %p127 = pneg %p48
        $region18: #{tpu_custom_call.1} parent=15 // pred_check_branch
          %129 = sbr.rel (%p127) target = $region20
        $region19: #{tpu_custom_call.1} parent=15 // pred_region
          %s130 = sand.u32 %s38, 1
          %s131 = scalar_lea.sflag [#allocation4], %s130
          %s132 = sand.u32 %s38, 1
          %s133 = smul.addr %s132, 16
          %s134 = scalar_lea.vmem [#allocation3], %s133
          %136 = vsyncadd %s131, 0
          %s137 = smul.addr %s21, 2
          %s138 = sadd.s32 %s22, %s137
          %s139 = smul.addr %s138, 8
          %s140 = scalar_lea.hbm %s0, %s139
          %s141 = sshll.u32 %s140, 4
          %s142 = int_to_ptr.hbm [resolvable:$true] %s141
          %s143 = sshll.u32 %s134, 4
          %s144 = int_to_ptr.vmem [resolvable:$true] %s143
          %149 = dma.hbm_to_vmem [thread:$0]  %s142, 256, %s144, %s131, 128, 128, 8
        $region20: #{tpu_custom_call.1} parent=15 // pred_fallthru
          _
        // Predicated region
        $region21: #{tpu_custom_call.1} parent=15 // pred_check
          %p150 = pneg %p76
        $region22: #{tpu_custom_call.1} parent=15 // pred_check_branch
          %152 = sbr.rel (%p150) target = $region24
        $region23: #{tpu_custom_call.1} parent=15 // pred_region
          %s153 = sand.u32 %s66, 1
          %s154 = scalar_lea.sflag [#allocation6], %s153
          %s155 = sand.u32 %s66, 1
          %s156 = scalar_lea.vmem [#allocation5], %s155
          %158 = vsyncadd %s154, 0
          %s159 = sadd.s32 %s22, %s21
          %s160 = scalar_lea.hbm %s1, %s159
          %s162 = sshll.u32 %s160, 4
          %s163 = int_to_ptr.hbm [resolvable:$true] %s162
          %s164 = sshll.u32 %s156, 4
          %s165 = int_to_ptr.vmem [resolvable:$true] %s164
          %167 = dma.hbm_to_vmem [thread:$0]  %s163, 16, %s165, %s154
        $region24: #{tpu_custom_call.1} parent=15 // pred_fallthru
          _
      $region16: #{tpu_custom_call.1} parent=5 // pred_fallthru
        _
      %p168 = scmp.le.s32.totalorder 1, %s14
      %p169 = scmp.lt.s32.totalorder %s14, 3
      %p170 = pnand %p168, %p169
      %p171 = pneg %p170
      // Predicated region
      $region25: #{tpu_custom_call.1} parent=5 // pred_check
        _
      $region26: #{tpu_custom_call.1} parent=5 // pred_check_branch
        %173 = sbr.rel (%p170) target = $region28
      $region27: #{tpu_custom_call.1} parent=5 // pred_region
        %s174 = ssub.s32 %s14, 1
        %s175 = sand.u32 %s41, 1
        %s176 = scalar_lea.sflag [#allocation4], %s175
        %s177 = sand.u32 %s41, 1
        %s178 = smul.addr %s177, 16
        %s179 = scalar_lea.vmem [#allocation3], %s178
        // Predicated region
        $region29: #{tpu_custom_call.1} parent=27 // pred_check
          %p180 = pneg %p54
        $region30: #{tpu_custom_call.1} parent=27 // pred_check_branch
          %182 = sbr.rel (%p180) target = $region32
        $region31: #{tpu_custom_call.1} parent=27 // pred_region
          %184 = dma.done %s176, 256
        $region32: #{tpu_custom_call.1} parent=27 // pred_fallthru
          _
        %s185 = sand.u32 %s69, 1
        %s186 = scalar_lea.sflag [#allocation6], %s185
        %s187 = sand.u32 %s69, 1
        %s188 = scalar_lea.vmem [#allocation5], %s187
        // Predicated region
        $region33: #{tpu_custom_call.1} parent=27 // pred_check
          %p189 = pneg %p82
        $region34: #{tpu_custom_call.1} parent=27 // pred_check_branch
          %191 = sbr.rel (%p189) target = $region36
        $region35: #{tpu_custom_call.1} parent=27 // pred_region
          %193 = dma.done %s186, 16
        $region36: #{tpu_custom_call.1} parent=27 // pred_fallthru
          _
        %s194 = sand.u32 %s41, 1
        %s195 = scalar_lea.sflag [#allocation4], %s194
        %s196 = sand.u32 %s41, 1
        %s197 = smul.addr %s196, 16
        %s198 = scalar_lea.vmem [#allocation3], %s197
        %p199 = pneg %p54
        %p200 = pneg %p51
        %s201 = sand.u32 %s69, 1
        %s202 = scalar_lea.sflag [#allocation6], %s201
        %s203 = sand.u32 %s69, 1
        %s204 = scalar_lea.vmem [#allocation5], %s203
        %p205 = pneg %p82
        %p206 = pneg %p79
        %p207 = pneg %p108
        %p208 = pneg %p105
        %p209 = scmp.lt.s32.totalorder %s23, 1
        %s210 = scalar_select %p209, %s23, 1
        %s211 = scalar_lea.vmem %s2, %s210
        %p212 = scmp.lt.s32.totalorder %s23, 1
        %s213 = scalar_select %p212, %s23, 1
        %s214 = scalar_lea.vmem %s2, %s213
        %p215 = scmp.eq.s32.totalorder %s24, 0
        // Predicated region
        $region37: #{tpu_custom_call.1} parent=27 // pred_check
          %p216 = pneg %p215
        $region38: #{tpu_custom_call.1} parent=27 // pred_check_branch
          %218 = sbr.rel (%p216) target = $region40
        $region39: #{tpu_custom_call.1} parent=27 // pred_region
          %vm219 = vcmask 516096
          %220 = vst.msk [vmem:[#allocation2] sm:$0x1] %vm219, 0.0
        $region40: #{tpu_custom_call.1} parent=27 // pred_fallthru
          _
        %v221 = vld [vmem:[%s179] sm:$0xff]
        %v222 = vld [vmem:[%s179 + $0x8] sm:$0xff]
        %v223 = vld [vmem:[%s188] sm:$0x1]
        %vm224 = vcmask 523264
        %v225 = vsel %vm224, %v221, -inf
        %v226 = vsel %vm224, %v222, -inf
        %v227 = vmax.f32 %v225, %v226
        %v228 = vrot.slane %v227, 4
        %v229 = vmax.f32 %v227, %v228
        %v230 = vrot.slane %v229, 2
        %v231 = vmax.f32 %v229, %v230
        %v232 = vrot.slane %v231, 1
        %v233 = vmax.f32 %v231, %v232
        %v234 = vsub.f32 %v221, %v233
        %v235 = vsub.f32 %v222, %v233
        %v236 = vmul.f32 %v234, 1.442695
        %v237 = vpow.pop %v236
        %v238 = vmul.f32 %v235, 1.442695
        %v239 = vpow.pop %v238
        %v240 = vsel %vm224, %v237, 0.0
        %v241 = vsel %vm224, %v239, 0.0
        %v242 = vadd.f32 %v240, %v241
        %v243 = vrot.slane %v242, 4
        %v244 = vadd.f32 %v242, %v243
        %v245 = vrot.slane %v244, 2
        %v246 = vadd.f32 %v244, %v245
        %v247 = vrot.slane %v246, 1
        %v248 = vadd.f32 %v246, %v247
        %v249 = vlog2.pop %v248
        %v250 = vmul.f32 %v249, 0.6931472
        %v251 = vadd.f32 %v233, %v250
        %v252 = vlaneseq
        %v253 = vshrl.u32 %v252, 7
        %v254 = vadd.s32 %v253, 8
        %v255 = vperm.slane %v223, 0
        %vm256 = vcmp.eq.s32.totalorder %v253, %v255
        %vm257 = vcmp.eq.s32.totalorder %v254, %v255
        %v258 = vsel %vm256, %v221, 0.0
        %v259 = vsel %vm257, %v222, 0.0
        %v260 = vsel %vm224, %v258, 0.0
        %v261 = vsel %vm224, %v259, 0.0
        %v262 = vadd.f32 %v260, %v261
        %v263 = vrot.slane %v262, 4
        %v264 = vadd.f32 %v262, %v263
        %v265 = vrot.slane %v264, 2
        %v266 = vadd.f32 %v264, %v265
        %v267 = vrot.slane %v266, 1
        %v268 = vadd.f32 %v266, %v267
        %v269 = vlaneseq
        %v270 = vand.u32 %v269, 127
        %s271 = smul.u32 %s24, 64
        %v272 = vstv %s271
        %v273 = vadd.s32 %v270, %v272
        %v274 = vstv %s23
        %vm275 = vcmp.lt.s32.totalorder %v273, 64
        %vm276 = vcmp.lt.s32.totalorder %v274, 2
        %v277 = vsel %vm276, 1, 0
        %vm278 = vcmp.eq.s32.totalorder %v277, 1
        %vm279 = vmand %vm275, %vm278
        %v280 = vld [vmem:[#allocation2] sm:$0x1]
        %v281 = vsub.f32 %v251, %v268
        %v282 = vsel %vm279, %v281, 0.0
        %v283 = vadd.f32 %v282, 0.0
        %v284 = vadd.f32 %v280, %v283
        %vm285 = vcmask 516096
        %286 = vst.msk [vmem:[#allocation2] sm:$0x1] %vm285, %v284
        // Predicated region
        $region41: #{tpu_custom_call.1} parent=27 // pred_check
          %p287 = pneg %p215
        $region42: #{tpu_custom_call.1} parent=27 // pred_check_branch
          %289 = sbr.rel (%p287) target = $region44
        $region43: #{tpu_custom_call.1} parent=27 // pred_region
          %v290 = vld [vmem:[#allocation2] sm:$0x1]
          %v291 = vsel %vm285, %v290, 0.0
          %292 = vadd.xlane.f32.xlu0 %v291
          %v293 = vpop.xlane.xlu0 %292
          %v294 = vrot.slane %v293, 4
          %v295 = vadd.f32 %v293, %v294
          %v296 = vrot.slane %v295, 2
          %v297 = vadd.f32 %v295, %v296
          %v298 = vrot.slane %v297, 1
          %v299 = vadd.f32 %v297, %v298
          %s300 = vtos %v299
          %v301 = vstv %s300
          %vm302 = vcmask 0
          %303 = vst.msk [vmem:[%s214] sm:$0x1] %vm302, %v301
        $region44: #{tpu_custom_call.1} parent=27 // pred_fallthru
          _
        %p304 = scmp.lt.s32.totalorder %s23, 1
        %s305 = scalar_select %p304, %s23, 1
        %s306 = scalar_lea.vmem %s2, %s305
        // Predicated region
        $region45: #{tpu_custom_call.1} parent=27 // pred_check
          %p307 = pneg %p105
        $region46: #{tpu_custom_call.1} parent=27 // pred_check_branch
          %309 = sbr.rel (%p307) target = $region48
        $region47: #{tpu_custom_call.1} parent=27 // pred_region
          _
        $region48: #{tpu_custom_call.1} parent=27 // pred_fallthru
          _
      $region28: #{tpu_custom_call.1} parent=5 // pred_fallthru
        _
      %p310 = scmp.le.s32.totalorder 2, %s14
      // Predicated region
      $region49: #{tpu_custom_call.1} parent=5 // pred_check
        %p311 = pneg %p310
      $region50: #{tpu_custom_call.1} parent=5 // pred_check_branch
        %313 = sbr.rel (%p311) target = $region52
      $region51: #{tpu_custom_call.1} parent=5 // pred_region
        %s314 = ssub.s32 %s14, 2
        // Predicated region
        $region53: #{tpu_custom_call.1} parent=51 // pred_check
          %p315 = pneg %p111
        $region54: #{tpu_custom_call.1} parent=51 // pred_check_branch
          %317 = sbr.rel (%p315) target = $region56
        $region55: #{tpu_custom_call.1} parent=51 // pred_region
          %p318 = scmp.lt.s32.totalorder %s25, 1
          %s319 = scalar_select %p318, %s25, 1
          %s320 = scalar_lea.vmem %s2, %s319
        $region56: #{tpu_custom_call.1} parent=51 // pred_fallthru
          _
      $region52: #{tpu_custom_call.1} parent=5 // pred_fallthru
        _
    $region6: #{tpu_custom_call.1} parent=1 // loop_footer
      %s18 = sadd.s32 1, %s14
    $region7: #{tpu_custom_call.1} parent=1 // loop_footer_branch
      %13 = sbr.rel target = $region3
    $region8: #{tpu_custom_call.1} parent=1 // loop_exit
      _
    %321 = vsyncpa [#allocation4], 1
    %s322 = scalar_lea.sflag [#allocation4], 1
    %323 = vsyncpa %s322, 1
    %324 = vsyncpa [#allocation6], 1
    %s325 = scalar_lea.sflag [#allocation6], 1
    %326 = vsyncpa %s325, 1

</llo_original>
